<compile_context>
chip_gen: v7x
topology: tpu7x:2x2x1
jax: 0.10.0
libtpu: 0.0.40
codegen_flags: <defaults>
</compile_context>

<pallas_src>
import functools

import jax
import jax.numpy as jnp
from jax import lax
from jax.experimental import pallas as pl
from jax.experimental.pallas import tpu as pltpu


def _mixed_norm_kernel(x_ref, gamma_ref, beta_ref, o_ref, *, half, eps):
    # x_ref / o_ref: (B, tc, HW)    gamma_ref / beta_ref: (1, C, 1) float32, grid-invariant.
    tc = x_ref.shape[1]
    hw = x_ref.shape[2]
    c0 = pl.program_id(0) * tc
    if tc % 8 == 0:
        c0 = pl.multiple_of(c0, 8)

    x32 = x_ref[...].astype(jnp.float32)                 # (B, tc, HW)

    # ---- single-pass (shifted) sum / sum-of-squares statistics -----------------------------
    # Shift by the per-(sample, channel) first spatial element so E[xc^2] - E[xc]^2 does not
    # cancel catastrophically when |mean| >> std.
    shift = x32[:, :, 0:1]                                # (B, tc, 1)
    xc = x32 - shift
    inv_hw = 1.0 / hw
    m1 = jnp.sum(xc, axis=2, keepdims=True) * inv_hw      # E[x - shift]        (B, tc, 1)
    m2 = jnp.sum(xc * xc, axis=2, keepdims=True) * inv_hw  # E[(x - shift)^2]   (B, tc, 1)
    row_mean = m1 + shift                                 # per-(sample, channel) mean
    row_var = jnp.maximum(m2 - m1 * m1, 0.0)              # biased per-row variance (IN)

    # BatchNorm half: per-channel stats over (batch, spatial). Every row has the same count,
    # so the mean of row means is exact, and the law of total variance gives the exact biased
    # batch variance from the per-row moments (no second pass over the data).
    bn_mean = jnp.mean(row_mean, axis=0, keepdims=True)   # (1, tc, 1)
    dm = row_mean - bn_mean
    bn_var = jnp.mean(row_var + dm * dm, axis=0, keepdims=True)

    # Which channels of this tile belong to the InstanceNorm half? (a tile may straddle C//2)
    ch = lax.broadcasted_iota(jnp.int32, (1, tc, 1), 1) + c0
    is_in = ch < half
    mean_used = jnp.where(is_in, row_mean, bn_mean)       # (B, tc, 1)
    var_used = jnp.where(is_in, row_var, bn_var)          # (B, tc, 1)

    # ---- fused scale / shift ----------------------------------------------------------------
    if tc == gamma_ref.shape[1]:                          # single-tile case: plain full read
        gamma = gamma_ref[...]
        beta = beta_ref[...]
    else:                                                 # resident block, slice per tile
        gamma = gamma_ref[:, pl.ds(c0, tc), :]
        beta = beta_ref[:, pl.ds(c0, tc), :]
    scale = gamma * lax.rsqrt(var_used + eps)             # (B, tc, 1)
    offset = beta - mean_used * scale                     # (B, tc, 1)

    low_precision = jnp.issubdtype(o_ref.dtype, jnp.floating) and o_ref.dtype.itemsize == 2
    if low_precision:
        # 16-bit activations: stats stay f32 (tiny); the per-element FMA runs at storage
        # precision (bf16 VALU on v6e/v7x), halving vreg/VMEM pressure of the output path.
        y = x_ref[...] * scale.astype(o_ref.dtype) + offset.astype(o_ref.dtype)
    else:
        y = x32 * scale + offset
    o_ref[...] = y.astype(o_ref.dtype)


def _vmem_capacity_bytes():
    """Per-TensorCore VMEM capacity, with a conservative (v7x) fallback if the query fails."""
    try:
        info = pltpu.get_tpu_info()
        for name in ("vmem_capacity_bytes", "vmem_size_bytes", "vmem_bytes"):
            v = getattr(info, name, None)
            if v:
                return int(v)
    except Exception:
        pass
    return 64 << 20


def _choose_channel_tile(B, C, HW, itemsize, vmem_cap):
    """Channel tile: a multiple of 8 (or C itself) sized so the whole pipeline fits VMEM.

    Per-block VMEM estimate: 2 double-buffered input blocks + 2 output blocks (input dtype)
    plus ~2 block-sized f32 temporaries for the upcast / statistics pass.
    """
    if C % 8 != 0:
        return C                                   # "block equals full dim" is the only legal tile

    def vmem_need(t):
        return B * t * HW * (4 * itemsize + 8)

    budget = int(0.70 * vmem_cap)                  # leave room for params / compiler scratch
    blk_cap = 16 << 20                             # per-input-block target ceiling
    cands = [t for t in range(8, C + 1, 8) if C % t == 0]
    fitting = [t for t in cands
               if vmem_need(t) <= budget and B * t * HW * itemsize <= blk_cap]
    if not fitting:
        # TODO(synk): for very large B*H*W (nothing fits) split the InstanceNorm half into a
        #             batch-parallel pallas_call so only the BatchNorm half needs the full
        #             batch resident per block.
        return cands[0]
    # Small-VMEM dual-TC parts (v7x, 64 MiB/TC): keep >= 4 grid steps so each core gets
    # pipeline overlap; on 128 MiB single-core parts one big tile is fine.
    min_tiles = 4 if vmem_cap <= (64 << 20) else 1
    preferred = [t for t in fitting if C // t >= min_tiles]
    pool = preferred if preferred else fitting
    return max(pool)


def mixed_norm(x, gamma_in, beta_in, gamma_bn, beta_bn, *, eps=1e-5, tc=None):
    """x: (B, C, H, W). gamma_in/beta_in: (C//2,) InstanceNorm affine; gamma_bn/beta_bn: (C//2,)."""
    B, C, H, W = x.shape
    assert C % 2 == 0, "MixedNorm needs an even channel count"
    HW = H * W
    half = C // 2

    x3 = x.reshape(B, C, HW)                       # free reshape; HW sits on the lane axis
    vmem_cap = _vmem_capacity_bytes()
    if tc is None:
        tc = _choose_channel_tile(B, C, HW, x.dtype.itemsize, vmem_cap)
    assert C % tc == 0 and (tc % 8 == 0 or tc == C)

    # Affine parameters stay float32 (matching PyTorch's f32 affine) and live in a single
    # grid-invariant block, DMA'd once rather than per grid step.
    gamma_all = jnp.concatenate([gamma_in, gamma_bn]).astype(jnp.float32).reshape(1, C, 1)
    beta_all = jnp.concatenate([beta_in, beta_bn]).astype(jnp.float32).reshape(1, C, 1)

    # VMEM request: actual pipeline need (2 in + 2 out + f32 temps + params) + headroom,
    # clamped below the physical per-core capacity of the detected generation.
    blk = B * tc * HW
    need = blk * (4 * x.dtype.itemsize + 8) + 2 * C * 4 + (4 << 20)
    vmem_limit = int(min(max(need, 32 << 20), int(0.90 * vmem_cap)))

    grid = (C // tc,)
    kernel = functools.partial(_mixed_norm_kernel, half=half, eps=float(eps))

    n_elem = B * C * HW
    cost = pl.CostEstimate(
        flops=6 * n_elem,                          # shifted sum/sumsq + fused scale/shift FMA
        transcendentals=B * C,                     # one rsqrt per (sample, channel)
        bytes_accessed=2 * n_elem * x.dtype.itemsize + 2 * C * 4,
    )

    out = pl.pallas_call(
        kernel,
        out_shape=jax.ShapeDtypeStruct((B, C, HW), x.dtype),
        grid_spec=pltpu.PrefetchScalarGridSpec(
            num_scalar_prefetch=0,
            grid=grid,
            in_specs=[
                pl.BlockSpec((B, tc, HW), lambda i: (0, i, 0)),
                pl.BlockSpec((1, C, 1), lambda i: (0, 0, 0)),   # resident across the grid
                pl.BlockSpec((1, C, 1), lambda i: (0, 0, 0)),   # resident across the grid
            ],
            out_specs=pl.BlockSpec((B, tc, HW), lambda i: (0, i, 0)),
        ),
        compiler_params=pltpu.CompilerParams(
            dimension_semantics=("parallel",),
            vmem_limit_bytes=vmem_limit,
        ),
        cost_estimate=cost,
    )(x3, gamma_all, beta_all)

    return out.reshape(B, C, H, W)


def mixed_norm_ref(x, gamma_in, beta_in, gamma_bn, beta_bn, eps=1e-5):
    """Pure-JAX reference matching the PyTorch forward (train-mode BatchNorm)."""
    C = x.shape[1]
    half = C // 2
    x1, x2 = x[:, :half], x[:, half:]
    # InstanceNorm2d(affine=True): per-(sample, channel) stats over H, W (biased var).
    m1 = x1.mean(axis=(2, 3), keepdims=True)
    v1 = ((x1 - m1) ** 2).mean(axis=(2, 3), keepdims=True)
    o1 = (x1 - m1) / jnp.sqrt(v1 + eps)
    o1 = o1 * gamma_in[None, :, None, None] + beta_in[None, :, None, None]
    # BatchNorm2d (training forward): per-channel stats over N, H, W (biased var).
    m2 = x2.mean(axis=(0, 2, 3), keepdims=True)
    v2 = ((x2 - m2) ** 2).mean(axis=(0, 2, 3), keepdims=True)
    o2 = (x2 - m2) / jnp.sqrt(v2 + eps)
    o2 = o2 * gamma_bn[None, :, None, None] + beta_bn[None, :, None, None]
    return jnp.concatenate([o1, o2], axis=1)


if __name__ == "__main__":
    key = jax.random.PRNGKey(0)
    batch, channels, spatial = 2, 4, 16             # features=4 -> split into 2 + 2 channels
    kx, kg1, kb1, kg2, kb2 = jax.random.split(key, 5)

    x = jax.random.normal(kx, (batch, channels, spatial, spatial), jnp.float32)
    half = channels // 2
    # Module init is gamma=1, beta=0; perturb slightly so the affine path is actually exercised.
    gamma_in = 1.0 + 0.1 * jax.random.normal(kg1, (half,), jnp.float32)
    beta_in = 0.1 * jax.random.normal(kb1, (half,), jnp.float32)
    gamma_bn = 1.0 + 0.1 * jax.random.normal(kg2, (half,), jnp.float32)
    beta_bn = 0.1 * jax.random.normal(kb2, (half,), jnp.float32)

    y = mixed_norm(x, gamma_in, beta_in, gamma_bn, beta_bn)
    y = jax.block_until_ready(y)

    y_ref = mixed_norm_ref(x, gamma_in, beta_in, gamma_bn, beta_bn)
    assert y.shape == x.shape
    assert jnp.allclose(y, y_ref, atol=1e-4, rtol=1e-4), "mismatch vs reference"

    print("KERNEL_OK")
</pallas_src>

<mosaic_0001>
module attributes {stable_mosaic.version = 11 : i64} {
  func.func @_mixed_norm_kernel(%arg0: i32, %arg1: memref<2x4x256xf32, #tpu.memory_space<vmem>>, %arg2: memref<1x4x1xf32, #tpu.memory_space<vmem>>, %arg3: memref<1x4x1xf32, #tpu.memory_space<vmem>>, %arg4: memref<2x4x256xf32, #tpu.memory_space<vmem>>) attributes {dimension_semantics = [#tpu.dimension_semantics<parallel>], iteration_bounds = array<i64: 1>, scalar_prefetch = 0 : i64, scratch_operands = 0 : i64, tpu.core_type = #tpu.core_type<tc>, window_params = [{transform_indices = @transform_0, window_bounds = array<i64: 2, 4, 256>}, {pipeline_mode = #tpu.pipeline_mode<synchronous>, transform_indices = @transform_1, window_bounds = array<i64: 1, 4, 1>}, {pipeline_mode = #tpu.pipeline_mode<synchronous>, transform_indices = @transform_2, window_bounds = array<i64: 1, 4, 1>}, {transform_indices = @transform_3, window_bounds = array<i64: 2, 4, 256>}]} {
    %c4_i32 = arith.constant 4 : i32
    %0 = arith.muli %arg0, %c4_i32 : i32
    %c0 = arith.constant 0 : index
    %c0_0 = arith.constant 0 : index
    %c0_1 = arith.constant 0 : index
    %1 = vector.load %arg1[%c0, %c0_0, %c0_1] : memref<2x4x256xf32, #tpu.memory_space<vmem>>, vector<2x4x256xf32>
    %2 = vector.extract_strided_slice %1 {offsets = [0, 0, 0], sizes = [2, 4, 1], strides = [1, 1, 1]} : vector<2x4x256xf32> to vector<2x4x1xf32>
    %3 = vector.broadcast %2 : vector<2x4x1xf32> to vector<2x4x256xf32>
    %4 = arith.subf %1, %3 : vector<2x4x256xf32>
    %cst = arith.constant dense<0.000000e+00> : vector<2x4xf32>
    %5 = vector.multi_reduction <add>, %4, %cst [2] : vector<2x4x256xf32> to vector<2x4xf32>
    %6 = vector.shape_cast %5 : vector<2x4xf32> to vector<2x4x1xf32>
    %cst_2 = arith.constant 3.906250e-03 : f32
    %7 = vector.broadcast %cst_2 : f32 to vector<2x4x1xf32>
    %8 = arith.mulf %6, %7 : vector<2x4x1xf32>
    %9 = arith.mulf %4, %4 : vector<2x4x256xf32>
    %cst_3 = arith.constant dense<0.000000e+00> : vector<2x4xf32>
    %10 = vector.multi_reduction <add>, %9, %cst_3 [2] : vector<2x4x256xf32> to vector<2x4xf32>
    %11 = vector.shape_cast %10 : vector<2x4xf32> to vector<2x4x1xf32>
    %cst_4 = arith.constant 3.906250e-03 : f32
    %12 = vector.broadcast %cst_4 : f32 to vector<2x4x1xf32>
    %13 = arith.mulf %11, %12 : vector<2x4x1xf32>
    %14 = arith.addf %8, %2 : vector<2x4x1xf32>
    %15 = arith.mulf %8, %8 : vector<2x4x1xf32>
    %16 = arith.subf %13, %15 : vector<2x4x1xf32>
    %cst_5 = arith.constant 0.000000e+00 : f32
    %17 = vector.broadcast %cst_5 : f32 to vector<2x4x1xf32>
    %18 = arith.maximumf %16, %17 : vector<2x4x1xf32>
    %cst_6 = arith.constant dense<0.000000e+00> : vector<4x1xf32>
    %19 = vector.multi_reduction <add>, %14, %cst_6 [0] : vector<2x4x1xf32> to vector<4x1xf32>
    %20 = vector.shape_cast %19 : vector<4x1xf32> to vector<1x4x1xf32>
    %cst_7 = arith.constant 2.000000e+00 : f32
    %21 = vector.broadcast %cst_7 : f32 to vector<1x4x1xf32>
    %22 = arith.divf %20, %21 : vector<1x4x1xf32>
    %23 = vector.broadcast %22 : vector<1x4x1xf32> to vector<2x4x1xf32>
    %24 = arith.subf %14, %23 : vector<2x4x1xf32>
    %25 = arith.mulf %24, %24 : vector<2x4x1xf32>
    %26 = arith.addf %18, %25 : vector<2x4x1xf32>
    %cst_8 = arith.constant dense<0.000000e+00> : vector<4x1xf32>
    %27 = vector.multi_reduction <add>, %26, %cst_8 [0] : vector<2x4x1xf32> to vector<4x1xf32>
    %28 = vector.shape_cast %27 : vector<4x1xf32> to vector<1x4x1xf32>
    %cst_9 = arith.constant 2.000000e+00 : f32
    %29 = vector.broadcast %cst_9 : f32 to vector<1x4x1xf32>
    %30 = arith.divf %28, %29 : vector<1x4x1xf32>
    %31 = tpu.iota {dimensions = array<i32: 1>} : vector<1x4x1xi32>
    %32 = vector.broadcast %0 : i32 to vector<1x4x1xi32>
    %33 = arith.addi %31, %32 : vector<1x4x1xi32>
    %c2_i32 = arith.constant 2 : i32
    %34 = vector.broadcast %c2_i32 : i32 to vector<1x4x1xi32>
    %35 = arith.cmpi slt, %33, %34 : vector<1x4x1xi32>
    %36 = vector.shape_cast %35 : vector<1x4x1xi1> to vector<1x4x1xi1>
    %37 = vector.broadcast %36 : vector<1x4x1xi1> to vector<2x4x1xi1>
    %38 = vector.shape_cast %22 : vector<1x4x1xf32> to vector<1x4x1xf32>
    %39 = vector.broadcast %38 : vector<1x4x1xf32> to vector<2x4x1xf32>
    %40 = arith.select %37, %14, %39 : vector<2x4x1xi1>, vector<2x4x1xf32>
    %41 = vector.shape_cast %35 : vector<1x4x1xi1> to vector<1x4x1xi1>
    %42 = vector.broadcast %41 : vector<1x4x1xi1> to vector<2x4x1xi1>
    %43 = vector.shape_cast %30 : vector<1x4x1xf32> to vector<1x4x1xf32>
    %44 = vector.broadcast %43 : vector<1x4x1xf32> to vector<2x4x1xf32>
    %45 = arith.select %42, %18, %44 : vector<2x4x1xi1>, vector<2x4x1xf32>
    %c0_10 = arith.constant 0 : index
    %c0_11 = arith.constant 0 : index
    %c0_12 = arith.constant 0 : index
    %46 = vector.load %arg2[%c0_10, %c0_11, %c0_12] : memref<1x4x1xf32, #tpu.memory_space<vmem>>, vector<1x4x1xf32>
    %c0_13 = arith.constant 0 : index
    %c0_14 = arith.constant 0 : index
    %c0_15 = arith.constant 0 : index
    %47 = vector.load %arg3[%c0_13, %c0_14, %c0_15] : memref<1x4x1xf32, #tpu.memory_space<vmem>>, vector<1x4x1xf32>
    %cst_16 = arith.constant 9.99999974E-6 : f32
    %48 = vector.broadcast %cst_16 : f32 to vector<2x4x1xf32>
    %49 = arith.addf %45, %48 : vector<2x4x1xf32>
    %50 = math.rsqrt %49 : vector<2x4x1xf32>
    %51 = vector.broadcast %46 : vector<1x4x1xf32> to vector<2x4x1xf32>
    %52 = arith.mulf %51, %50 : vector<2x4x1xf32>
    %53 = arith.mulf %40, %52 : vector<2x4x1xf32>
    %54 = vector.broadcast %47 : vector<1x4x1xf32> to vector<2x4x1xf32>
    %55 = arith.subf %54, %53 : vector<2x4x1xf32>
    %56 = vector.broadcast %52 : vector<2x4x1xf32> to vector<2x4x256xf32>
    %57 = arith.mulf %1, %56 : vector<2x4x256xf32>
    %58 = vector.broadcast %55 : vector<2x4x1xf32> to vector<2x4x256xf32>
    %59 = arith.addf %57, %58 : vector<2x4x256xf32>
    %c0_17 = arith.constant 0 : index
    %c0_18 = arith.constant 0 : index
    %c0_19 = arith.constant 0 : index
    %60 = vector.load %arg4[%c0_17, %c0_18, %c0_19] : memref<2x4x256xf32, #tpu.memory_space<vmem>>, vector<2x4x256xf32>
    tpu.vector_store %arg4[%c0_17, %c0_18, %c0_19], %59 {strides = array<i32>} : memref<2x4x256xf32, #tpu.memory_space<vmem>>, vector<2x4x256xf32>,
    return
  }
  func.func @transform_0(%arg0: i32) -> (i32, i32, i32) {
    %c0_i32 = arith.constant 0 : i32
    %c0_i32_0 = arith.constant 0 : i32
    %c0_i32_1 = arith.constant 0 : i32
    return %c0_i32, %arg0, %c0_i32_0 : i32, i32, i32
  }
  func.func @transform_1(%arg0: i32) -> (i32, i32, i32) {
    %c0_i32 = arith.constant 0 : i32
    %c0_i32_0 = arith.constant 0 : i32
    %c0_i32_1 = arith.constant 0 : i32
    %c0_i32_2 = arith.constant 0 : i32
    return %c0_i32, %c0_i32_0, %c0_i32_1 : i32, i32, i32
  }
  func.func @transform_2(%arg0: i32) -> (i32, i32, i32) {
    %c0_i32 = arith.constant 0 : i32
    %c0_i32_0 = arith.constant 0 : i32
    %c0_i32_1 = arith.constant 0 : i32
    %c0_i32_2 = arith.constant 0 : i32
    return %c0_i32, %c0_i32_0, %c0_i32_1 : i32, i32, i32
  }
  func.func @transform_3(%arg0: i32) -> (i32, i32, i32) {
    %c0_i32 = arith.constant 0 : i32
    %c0_i32_0 = arith.constant 0 : i32
    %c0_i32_1 = arith.constant 0 : i32
    return %c0_i32, %arg0, %c0_i32_0 : i32, i32, i32
  }
}

</mosaic_0001>

<llo_original>
// kernel: tpu_custom_call.1
$region0: #{tpu_custom_call.1}
  #allocation0 [shape = 'u32[]', space=smem, size = 0x4, offset = 0x4, fixed_abs, tag = 'smem constant byte address 0x4 - core index']
  #allocation1 [shape = 'u32[144,128]{1,0:T(1,128)}', space=vmem, size = 0x12000, scoped, tag = 'internal scratch']
  %s0 = inlined_call_operand.hbm [shape: f32[2,4,256], index: 0, kind: input, shape index: {}]
  %s1 = inlined_call_operand.vmem [shape: f32[1,4,1], index: 1, kind: input, shape index: {}]
  %s2 = inlined_call_operand.vmem [shape: f32[1,4,1], index: 2, kind: input, shape index: {}]
  %s3 = inlined_call_operand.hbm [shape: f32[2,4,256], index: 3, kind: output, shape index: {}]
  %s4 = sld [smem:[#allocation0]]
  $region26: #{tpu_custom_call.1} parent=0
    _
  %s6 = ssub.s32 1, %s4
  %s7 = scalar_select 0, %s6, %s4
  $region1: #{tpu_custom_call.1} parent=0
    #allocation2 [shape = 'u8[8192]{0}', space=vmem, size = 0x2000, scoped, tag = 'input window, operand 0, single buffered']
    #allocation3 [shape = 's32[1]{0}', space=sflag, size = 0x4, scoped, tag = 'scoped memory for tpu_custom_call.1']
    #allocation4 [shape = 's32[1]{0}', space=sflag, size = 0x4, scoped, tag = 'scoped memory for tpu_custom_call.1']
    #allocation5 [shape = 'u8[8192]{0}', space=vmem, size = 0x2000, scoped, tag = 'output window, operand 0, single buffered']
    %8 = vsyncpa [#allocation3], 0
    %9 = vsyncpa [#allocation4], 0
    // Predicated region
    $region2: #{tpu_custom_call.1} parent=1 // pred_check
      _
    $region3: #{tpu_custom_call.1} parent=1 // pred_check_branch
      %11 = sbr.rel (0) target = $region5
    $region4: #{tpu_custom_call.1} parent=1 // pred_region
      %s13 = ssub.s32 256, 256
      %14 = vsyncadd [#allocation3], %s13
      %s15 = sshll.u32 [#allocation2], 4
      %s16 = int_to_ptr.vmem [resolvable:$true] %s15
      %21 = dma.hbm_to_vmem [thread:$0]  %s0, 256, %s16, [#allocation3], 128, 128, 8
    $region5: #{tpu_custom_call.1} parent=1 // pred_fallthru
      _
    // Predicated region
    $region6: #{tpu_custom_call.1} parent=1 // pred_check
      _
    $region7: #{tpu_custom_call.1} parent=1 // pred_check_branch
      %23 = sbr.rel (0) target = $region9
    $region8: #{tpu_custom_call.1} parent=1 // pred_region
      _
    $region9: #{tpu_custom_call.1} parent=1 // pred_fallthru
      _
    // Predicated region
    $region10: #{tpu_custom_call.1} parent=1 // pred_check
      _
    $region11: #{tpu_custom_call.1} parent=1 // pred_check_branch
      %25 = sbr.rel (0) target = $region13
    $region12: #{tpu_custom_call.1} parent=1 // pred_region
      _
    $region13: #{tpu_custom_call.1} parent=1 // pred_fallthru
      _
    // Predicated region
    $region14: #{tpu_custom_call.1} parent=1 // pred_check
      _
    $region15: #{tpu_custom_call.1} parent=1 // pred_check_branch
      %27 = sbr.rel (0) target = $region17
    $region16: #{tpu_custom_call.1} parent=1 // pred_region
      %28 = dma.done [#allocation3], 256
    $region17: #{tpu_custom_call.1} parent=1 // pred_fallthru
      _
    %s29 = smul.u32 0, 4
    %v30 = vld [vmem:[#allocation2] sm:$0xff]
    %v31 = vld [vmem:[#allocation2 + $0x8] sm:$0xff]
    %33 = vset.pattern.permute.xlu0 0
    %34 = vperm.xlu0 %33, %v30
    %v35 = vpop.permute.xlu0 %34
    %v38 = vunpack.c.l.s4 839922192
    %v39 = vunpack.c.0.s8 %v38
    %v40 = vlaneseq
    %v41 = vshrl.u32 %v40, 7
    %v42 = vsub.s32 %v39, %v41
    %v43 = vrot.slane %v35, %v42
    %45 = vset.pattern.permute.xlu0 0
    %46 = vperm.xlu0 %45, %v31
    %v47 = vpop.permute.xlu0 %46
    %v50 = vunpack.c.l.s4 839922192
    %v51 = vunpack.c.0.s8 %v50
    %v52 = vlaneseq
    %v53 = vshrl.u32 %v52, 7
    %v54 = vsub.s32 %v51, %v53
    %v55 = vrot.slane %v47, %v54
    %v56 = vsub.f32 %v30, %v43
    %v57 = vsub.f32 %v31, %v55
    %v60 = vcombine.high %v56, %v56
    %v61 = vcombine.high %v57, %v57
    %vm64 = vcmask 1043456
    %v65 = vsel %vm64, %v56, 0.0
    %v66 = vsel %vm64, %v60, 0.0
    %v67 = vadd.f32 %v65, %v66
    %68 = vadd.xlane.f32.xlu0 %v67
    %v69 = vpop.xlane.xlu0 %68
    %v70 = vsel %vm64, %v57, 0.0
    %v71 = vsel %vm64, %v61, 0.0
    %v72 = vadd.f32 %v70, %v71
    %73 = vadd.xlane.f32.xlu0 %v72
    %v74 = vpop.xlane.xlu0 %73
    %v75 = vmul.f32 %v69, 0.00390625
    %v76 = vmul.f32 %v74, 0.00390625
    %v77 = vmul.f32 %v56, %v56
    %v78 = vmul.f32 %v57, %v57
    %v81 = vcombine.high %v77, %v77
    %v82 = vcombine.high %v78, %v78
    %v85 = vsel %vm64, %v77, 0.0
    %v86 = vsel %vm64, %v81, 0.0
    %v87 = vadd.f32 %v85, %v86
    %88 = vadd.xlane.f32.xlu0 %v87
    %v89 = vpop.xlane.xlu0 %88
    %v90 = vsel %vm64, %v78, 0.0
    %v91 = vsel %vm64, %v82, 0.0
    %v92 = vadd.f32 %v90, %v91
    %93 = vadd.xlane.f32.xlu0 %v92
    %v94 = vpop.xlane.xlu0 %93
    %v95 = vmul.f32 %v89, 0.00390625
    %v96 = vmul.f32 %v94, 0.00390625
    %v97 = vadd.f32 %v75, %v30
    %v98 = vadd.f32 %v76, %v31
    %v99 = vmul.f32 %v75, %v75
    %v100 = vmul.f32 %v76, %v76
    %v101 = vsub.f32 %v95, %v99
    %v102 = vsub.f32 %v96, %v100
    %v103 = vmax.f32 %v101, 0.0
    %v104 = vmax.f32 %v102, 0.0
    %vm105 = vcmask 3072
    %v106 = vsel %vm105, %v97, 0.0
    %v107 = vsel %vm105, %v98, 0.0
    %v108 = vadd.f32 %v106, %v107
    %v109 = vrcp.pop 2.0
    %v110 = vmul.f32 %v108, %v109
    %v111 = vsub.f32 %v97, %v110
    %v112 = vsub.f32 %v98, %v110
    %v113 = vmul.f32 %v111, %v111
    %v114 = vmul.f32 %v112, %v112
    %v115 = vadd.f32 %v103, %v113
    %v116 = vadd.f32 %v104, %v114
    %v117 = vsel %vm105, %v115, 0.0
    %v118 = vsel %vm105, %v116, 0.0
    %v119 = vadd.f32 %v117, %v118
    %v120 = vmul.f32 %v119, %v109
    %v121 = vlaneseq
    %v122 = vshrl.u32 %v121, 7
    %v123 = vstv %s29
    %v124 = vadd.s32 %v122, %v123
    %vm125 = vcmp.lt.s32.totalorder %v124, 2
    %v126 = vsel %vm125, 1, 0
    %vm127 = vcmp.eq.s32.totalorder %v126, 1
    %v128 = vsel %vm127, %v97, %v110
    %v129 = vsel %vm127, %v98, %v110
    %v130 = vsel %vm127, %v103, %v120
    %v131 = vsel %vm127, %v104, %v120
    %v132 = vld [vmem:[%s1] sm:$0xf]
    %v133 = vld [vmem:[%s2] sm:$0xf]
    %v134 = vadd.f32 %v130, 1e-05
    %v135 = vadd.f32 %v131, 1e-05
    %v136 = vrsqrt.pop %v134
    %v137 = vrsqrt.pop %v135
    %v138 = vmul.f32 %v132, %v136
    %v139 = vmul.f32 %v132, %v137
    %v140 = vmul.f32 %v128, %v138
    %v141 = vmul.f32 %v129, %v139
    %v142 = vsub.f32 %v133, %v140
    %v143 = vsub.f32 %v133, %v141
    %145 = vset.pattern.permute.xlu0 0
    %146 = vperm.xlu0 %145, %v138
    %v147 = vpop.permute.xlu0 %146
    %149 = vset.pattern.permute.xlu0 0
    %150 = vperm.xlu0 %149, %v139
    %v151 = vpop.permute.xlu0 %150
    %v153 = vunpack.c.l.s4 839922192
    %v154 = vunpack.c.0.s8 %v153
    %v155 = vlaneseq
    %v156 = vshrl.u32 %v155, 7
    %v157 = vsub.s32 %v154, %v156
    %v158 = vrot.slane %v147, %v157
    %v160 = vunpack.c.l.s4 839922192
    %v161 = vunpack.c.0.s8 %v160
    %v162 = vlaneseq
    %v163 = vshrl.u32 %v162, 7
    %v164 = vsub.s32 %v161, %v163
    %v165 = vrot.slane %v151, %v164
    %v168 = vmul.f32 %v30, %v158
    %v169 = vmul.f32 %v31, %v165
    %171 = vset.pattern.permute.xlu0 0
    %172 = vperm.xlu0 %171, %v142
    %v173 = vpop.permute.xlu0 %172
    %175 = vset.pattern.permute.xlu0 0
    %176 = vperm.xlu0 %175, %v143
    %v177 = vpop.permute.xlu0 %176
    %v179 = vunpack.c.l.s4 839922192
    %v180 = vunpack.c.0.s8 %v179
    %v181 = vlaneseq
    %v182 = vshrl.u32 %v181, 7
    %v183 = vsub.s32 %v180, %v182
    %v184 = vrot.slane %v173, %v183
    %v186 = vunpack.c.l.s4 839922192
    %v187 = vunpack.c.0.s8 %v186
    %v188 = vlaneseq
    %v189 = vshrl.u32 %v188, 7
    %v190 = vsub.s32 %v187, %v189
    %v191 = vrot.slane %v177, %v190
    %v194 = vadd.f32 %v168, %v184
    %v195 = vadd.f32 %v169, %v191
    %196 = vst [vmem:[#allocation5] sm:$0xff] %v194
    %197 = vst [vmem:[#allocation5 + $0x8] sm:$0xff] %v195
    // Predicated region
    $region18: #{tpu_custom_call.1} parent=1 // pred_check
      _
    $region19: #{tpu_custom_call.1} parent=1 // pred_check_branch
      %199 = sbr.rel (0) target = $region21
    $region20: #{tpu_custom_call.1} parent=1 // pred_region
      %s201 = ssub.s32 256, 256
      %202 = vsyncadd [#allocation4], %s201
      %s203 = sshll.u32 [#allocation5], 4
      %s204 = int_to_ptr.vmem [resolvable:$true] %s203
      %209 = dma.vmem_to_hbm [thread:$0]  %s204, 256, %s3, [#allocation4], 128, 128, 8
    $region21: #{tpu_custom_call.1} parent=1 // pred_fallthru
      _
    // Predicated region
    $region22: #{tpu_custom_call.1} parent=1 // pred_check
      _
    $region23: #{tpu_custom_call.1} parent=1 // pred_check_branch
      %211 = sbr.rel (0) target = $region25
    $region24: #{tpu_custom_call.1} parent=1 // pred_region
      %212 = dma.done [#allocation4], 256
    $region25: #{tpu_custom_call.1} parent=1 // pred_fallthru
      _
    %213 = vsyncpa [#allocation3], 1
    %214 = vsyncpa [#allocation4], 1

</llo_original>
